<compile_context>
chip_gen: v5e
topology: v5e:2x2
jax: 0.10.0
libtpu: 0.0.40
codegen_flags: <defaults>
</compile_context>

<pallas_src>
import jax
import jax.numpy as jnp
from jax.experimental import pallas as pl
from jax.experimental.pallas import tpu as pltpu


def _cdiv(a, b):
    return (a + b - 1) // b


def _round_up(n, m):
    return _cdiv(n, m) * m


def _softplus(x):
    # Numerically stable softplus; matches torch.nn.Softplus (torch's x>20 passthrough
    # differs from this by <1e-9, far below test tolerance).
    return jnp.maximum(x, 0.0) + jnp.log1p(jnp.exp(-jnp.abs(x)))


def _make_kernel(n_cond):
    """n_cond ConditionalLinear layers (softplus + timestep gate) + 1 plain Linear."""

    def kernel(inp_ref, g_ref, *refs):
        # refs = [W_1, b_1, ..., W_n, b_n, W_out, b_out, out_ref]
        out_ref = refs[-1]
        h = inp_ref[0].astype(jnp.float32)                     # (TS, D_in)
        g_all = g_ref[0].astype(jnp.float32)                   # (n_cond, H) gates
        for l in range(n_cond):
            w = refs[2 * l][...]                               # f32 or bf16 operand
            b = refs[2 * l + 1][...]                           # (1, H) f32
            z = jnp.dot(h.astype(w.dtype), w,
                        preferred_element_type=jnp.float32) + b
            g = g_all[l:l + 1, :]                              # (1, H) gate row
            h = g * _softplus(z)                               # f32 elementwise
        w_out = refs[2 * n_cond][...]
        b_out = refs[2 * n_cond + 1][...]
        o = jnp.dot(h.astype(w_out.dtype), w_out,
                    preferred_element_type=jnp.float32) + b_out
        out_ref[0] = o.astype(out_ref.dtype)

    return kernel


def cond_ffn_forward(x, y_t, t, params, num_MLP_layers=4, *, row_tile=512,
                     mxu_dtype=None):
    """Forward pass of ConditionalFeedwordNetwork.

    x:   (B, S, x_dim) float,  y_t: (B, S, y_dim) float,  t: (B,) int timesteps.
    mxu_dtype: None -> f32 MXU operands (exact); jnp.bfloat16 -> bf16 operands
               (recommended on v6e/v7x; elementwise math stays f32).
    """
    B, S, x_dim = x.shape
    y_dim = y_t.shape[-1]
    n_cond = num_MLP_layers - 1
    cond_params = params["cond"]
    assert len(cond_params) == n_cond
    W_out, b_out = params["out"]
    D_in = y_dim + x_dim
    assert cond_params[0][0].shape[0] == D_in
    H = cond_params[0][0].shape[1]
    out_dim = W_out.shape[1]

    w_dtype = jnp.float32 if mxu_dtype is None else mxu_dtype
    w_item = jnp.dtype(w_dtype).itemsize

    def _lane(n):
        return _round_up(n, 128)

    def _sub(n):
        return _round_up(n, 8)

    OUT_PAD = _lane(out_dim)   # lane-dense output (unmasked vst); sliced after call

    # Resident-parameter VMEM footprint (lane/sublane padded, chosen MXU dtype).
    resident_bytes = (_sub(D_in) * _lane(H)
                      + (n_cond - 1) * _sub(H) * _lane(H)
                      + _sub(H) * _lane(OUT_PAD)) * w_item
    resident_bytes += (n_cond * _sub(1) * _lane(H) + _sub(1) * _lane(OUT_PAD)) * 4
    # Single-buffer the constant-index weights only once they are big enough for the
    # 2x default double-buffering to matter (v7x's 64 MiB VMEM).
    single_buffer_weights = resident_bytes > (8 << 20)

    def _vmem_plan(ts):
        streamed = 2 * (ts * _lane(D_in) * 4                  # input block (2 buffers)
                        + _sub(n_cond) * _lane(H) * 4         # gate block
                        + ts * _lane(OUT_PAD) * 4)            # output block
        work = 4 * ts * _lane(max(H, D_in, OUT_PAD)) * 4      # h/z temporaries headroom
        return resident_bytes * (1 if single_buffer_weights else 2) + streamed + work

    # Row tile along S (inside one batch), multiple of 8 sublanes.
    TS = min(row_tile, _round_up(S, 8))
    if B == 1 and S > 8 and _round_up(S, 8) <= TS:
        TS = _round_up(_cdiv(S, 2), 8)        # >=2 grid steps so both v7x TCs are fed
    while TS > 8 and _vmem_plan(TS) > (48 << 20):   # stay inside v7x's 64 MiB VMEM
        TS = _round_up(TS // 2, 8)

    S_tiles = _cdiv(S, TS)
    S_pad = S_tiles * TS
    vmem_limit = int(min(100 << 20, max(16 << 20, int(_vmem_plan(TS) * 1.5))))

    # Fuse torch.cat((y_t, x), dim=-1) once in the wrapper (tiny one-shot XLA op).
    inp = jnp.concatenate([y_t, x], axis=-1)                   # (B, S, D_in)
    if S_pad != S:
        inp = jnp.pad(inp, ((0, 0), (0, S_pad - S), (0, 0)))

    # Gather per-timestep gates to (B, n_cond, H) — no S-broadcast gate stream.
    t = t.astype(jnp.int32)
    gates = jnp.stack([E[t] for (_, _, E) in cond_params], axis=1).astype(jnp.float32)

    def _resident_spec(shape):
        idx = lambda b, s: (0,) * len(shape)
        if single_buffer_weights:
            try:   # single-buffer weights whose block index never changes (v7x VMEM)
                return pl.BlockSpec(shape, idx, pipeline_mode=pl.Buffered(1))
            except (TypeError, AttributeError):
                pass
        return pl.BlockSpec(shape, idx)

    inputs = [inp, gates]
    in_specs = [
        pl.BlockSpec((1, TS, D_in), lambda b, s: (b, s, 0)),
        pl.BlockSpec((1, n_cond, H), lambda b, s: (b, 0, 0)),
    ]
    for (W, b, _) in cond_params:
        inputs += [W.astype(w_dtype), b.astype(jnp.float32).reshape(1, H)]
        in_specs += [_resident_spec(W.shape), _resident_spec((1, H))]
    W_out_p = jnp.pad(W_out, ((0, 0), (0, OUT_PAD - out_dim))).astype(w_dtype)
    b_out_p = jnp.pad(b_out, (0, OUT_PAD - out_dim)).astype(jnp.float32).reshape(1, OUT_PAD)
    inputs += [W_out_p, b_out_p]
    in_specs += [_resident_spec((H, OUT_PAD)), _resident_spec((1, OUT_PAD))]

    out = pl.pallas_call(
        _make_kernel(n_cond),
        out_shape=jax.ShapeDtypeStruct((B, S_pad, OUT_PAD), x.dtype),
        grid=(B, S_tiles),
        in_specs=in_specs,
        out_specs=pl.BlockSpec((1, TS, OUT_PAD), lambda b, s: (b, s, 0)),
        compiler_params=pltpu.CompilerParams(
            dimension_semantics=("parallel", "parallel"),
            vmem_limit_bytes=vmem_limit,
        ),
    )(*inputs)
    return out[:, :S, :out_dim]


def init_params(key, data_dim, hidden, out_dim, n_steps, n_cond):
    """Deterministic synthetic parameters (shapes match the torch module)."""
    params = {"cond": [], "out": None}
    din = data_dim
    for _ in range(n_cond):
        key, k1, k2, k3 = jax.random.split(key, 4)
        bound = 1.0 / (din ** 0.5)
        W = jax.random.uniform(k1, (din, hidden), jnp.float32, -bound, bound)
        b = jax.random.uniform(k2, (hidden,), jnp.float32, -bound, bound)
        E = jax.random.uniform(k3, (n_steps, hidden), jnp.float32, 0.0, 1.0)  # embed.weight.uniform_()
        params["cond"].append((W, b, E))
        din = hidden
    key, k1, k2 = jax.random.split(key, 3)
    bound = 1.0 / (din ** 0.5)
    W_out = jax.random.uniform(k1, (din, out_dim), jnp.float32, -bound, bound)
    b_out = jax.random.uniform(k2, (out_dim,), jnp.float32, -bound, bound)
    params["out"] = (W_out, b_out)
    return params


def ref_forward(x, y_t, t, params):
    """Pure-JAX reference mirroring the PyTorch forward."""
    h = jnp.concatenate([y_t, x], axis=-1)
    for (W, b, E) in params["cond"]:
        z = h @ W + b
        h = E[t][:, None, :] * jax.nn.softplus(z)
    W_out, b_out = params["out"]
    return h @ W_out + b_out


if __name__ == "__main__":
    B, S = 2, 8
    x_dim, y_dim, timesteps, out_dim = 3, 2, 10, 5
    hidden = 32
    num_MLP_layers = 4          # -> lin1, lin2, lin3 (conditional) + lin4 (plain)
    n_steps = timesteps + 1

    key = jax.random.PRNGKey(0)
    kx, ky, kt, kp = jax.random.split(key, 4)
    x = jax.random.normal(kx, (B, S, x_dim), jnp.float32)
    y_t = jax.random.normal(ky, (B, S, y_dim), jnp.float32)
    t = jax.random.randint(kt, (B,), 0, n_steps, jnp.int32)

    params = init_params(kp, x_dim + y_dim, hidden, out_dim, n_steps, num_MLP_layers - 1)
    ref = ref_forward(x, y_t, t, params)

    # f32 MXU operands: exact path, checked tightly against the pure-JAX reference.
    out = jax.block_until_ready(cond_ffn_forward(x, y_t, t, params, num_MLP_layers))
    assert out.shape == (B, S, out_dim)
    assert jnp.allclose(out, ref, atol=2e-3, rtol=2e-3), "f32 kernel mismatch vs reference"

    # bf16 MXU operands (v6e/v7x production setting): looser tolerance, f32 accumulation.
    out_bf16 = jax.block_until_ready(
        cond_ffn_forward(x, y_t, t, params, num_MLP_layers, mxu_dtype=jnp.bfloat16))
    assert out_bf16.shape == (B, S, out_dim)
    assert jnp.allclose(out_bf16, ref, atol=1e-1, rtol=1e-1), "bf16 kernel mismatch vs reference"

    print("KERNEL_OK")
</pallas_src>

<mosaic_0001>
module attributes {stable_mosaic.version = 11 : i64} {
  func.func @kernel(%arg0: i32, %arg1: i32, %arg2: memref<1x8x5xf32, #tpu.memory_space<vmem>>, %arg3: memref<1x3x32xf32, #tpu.memory_space<vmem>>, %arg4: memref<5x32xf32, #tpu.memory_space<vmem>>, %arg5: memref<1x32xf32, #tpu.memory_space<vmem>>, %arg6: memref<32x32xf32, #tpu.memory_space<vmem>>, %arg7: memref<1x32xf32, #tpu.memory_space<vmem>>, %arg8: memref<32x32xf32, #tpu.memory_space<vmem>>, %arg9: memref<1x32xf32, #tpu.memory_space<vmem>>, %arg10: memref<32x128xf32, #tpu.memory_space<vmem>>, %arg11: memref<1x128xf32, #tpu.memory_space<vmem>>, %arg12: memref<1x8x128xf32, #tpu.memory_space<vmem>>) attributes {dimension_semantics = [#tpu.dimension_semantics<parallel>, #tpu.dimension_semantics<parallel>], iteration_bounds = array<i64: 2, 1>, scalar_prefetch = 0 : i64, scratch_operands = 0 : i64, tpu.core_type = #tpu.core_type<tc>, window_params = [{transform_indices = @transform_0, window_bounds = array<i64: 1, 8, 5>}, {transform_indices = @transform_1, window_bounds = array<i64: 1, 3, 32>}, {pipeline_mode = #tpu.pipeline_mode<synchronous>, transform_indices = @transform_2, window_bounds = array<i64: 5, 32>}, {pipeline_mode = #tpu.pipeline_mode<synchronous>, transform_indices = @transform_3, window_bounds = array<i64: 1, 32>}, {pipeline_mode = #tpu.pipeline_mode<synchronous>, transform_indices = @transform_4, window_bounds = array<i64: 32, 32>}, {pipeline_mode = #tpu.pipeline_mode<synchronous>, transform_indices = @transform_5, window_bounds = array<i64: 1, 32>}, {pipeline_mode = #tpu.pipeline_mode<synchronous>, transform_indices = @transform_6, window_bounds = array<i64: 32, 32>}, {pipeline_mode = #tpu.pipeline_mode<synchronous>, transform_indices = @transform_7, window_bounds = array<i64: 1, 32>}, {pipeline_mode = #tpu.pipeline_mode<synchronous>, transform_indices = @transform_8, window_bounds = array<i64: 32, 128>}, {pipeline_mode = #tpu.pipeline_mode<synchronous>, transform_indices = @transform_9, window_bounds = array<i64: 1, 128>}, {transform_indices = @transform_10, window_bounds = array<i64: 1, 8, 128>}]} {
    %c0 = arith.constant 0 : index
    %c0_0 = arith.constant 0 : index
    %c0_1 = arith.constant 0 : index
    %0 = vector.load %arg2[%c0, %c0_0, %c0_1] : memref<1x8x5xf32, #tpu.memory_space<vmem>>, vector<1x8x5xf32>
    %1 = vector.shape_cast %0 : vector<1x8x5xf32> to vector<8x5xf32>
    %c0_2 = arith.constant 0 : index
    %c0_3 = arith.constant 0 : index
    %c0_4 = arith.constant 0 : index
    %2 = vector.load %arg3[%c0_2, %c0_3, %c0_4] : memref<1x3x32xf32, #tpu.memory_space<vmem>>, vector<1x3x32xf32>
    %3 = vector.shape_cast %2 : vector<1x3x32xf32> to vector<3x32xf32>
    %c0_5 = arith.constant 0 : index
    %c0_6 = arith.constant 0 : index
    %4 = vector.load %arg4[%c0_5, %c0_6] : memref<5x32xf32, #tpu.memory_space<vmem>>, vector<5x32xf32>
    %c0_7 = arith.constant 0 : index
    %c0_8 = arith.constant 0 : index
    %5 = vector.load %arg5[%c0_7, %c0_8] : memref<1x32xf32, #tpu.memory_space<vmem>>, vector<1x32xf32>
    %cst = arith.constant dense<0.000000e+00> : vector<8x32xf32>
    %6 = tpu.matmul %1, %4, %cst {dimension_numbers = #tpu.dot_dimension_numbers<[1], [0], [0], [1], [0, 0, 1, 1], [], []>} : vector<8x5xf32>, vector<5x32xf32>, vector<8x32xf32> -> vector<8x32xf32>
    %7 = vector.broadcast %5 : vector<1x32xf32> to vector<8x32xf32>
    %8 = arith.addf %6, %7 : vector<8x32xf32>
    %9 = vector.extract_strided_slice %3 {offsets = [0, 0], sizes = [1, 32], strides = [1, 1]} : vector<3x32xf32> to vector<1x32xf32>
    %cst_9 = arith.constant 0.000000e+00 : f32
    %10 = vector.broadcast %cst_9 : f32 to vector<8x32xf32>
    %11 = arith.maximumf %8, %10 : vector<8x32xf32>
    %12 = math.absf %8 : vector<8x32xf32>
    %cst_10 = arith.constant 0.000000e+00 : f32
    %13 = vector.broadcast %cst_10 : f32 to vector<8x32xf32>
    %14 = arith.subf %13, %12 : vector<8x32xf32>
    %15 = math.exp %14 : vector<8x32xf32>
    %16 = math.log1p %15 : vector<8x32xf32>
    %17 = arith.addf %11, %16 : vector<8x32xf32>
    %18 = vector.broadcast %9 : vector<1x32xf32> to vector<8x32xf32>
    %19 = arith.mulf %18, %17 : vector<8x32xf32>
    %c0_11 = arith.constant 0 : index
    %c0_12 = arith.constant 0 : index
    %20 = vector.load %arg6[%c0_11, %c0_12] : memref<32x32xf32, #tpu.memory_space<vmem>>, vector<32x32xf32>
    %c0_13 = arith.constant 0 : index
    %c0_14 = arith.constant 0 : index
    %21 = vector.load %arg7[%c0_13, %c0_14] : memref<1x32xf32, #tpu.memory_space<vmem>>, vector<1x32xf32>
    %cst_15 = arith.constant dense<0.000000e+00> : vector<8x32xf32>
    %22 = tpu.matmul %19, %20, %cst_15 {dimension_numbers = #tpu.dot_dimension_numbers<[1], [0], [0], [1], [0, 0, 1, 1], [], []>} : vector<8x32xf32>, vector<32x32xf32>, vector<8x32xf32> -> vector<8x32xf32>
    %23 = vector.broadcast %21 : vector<1x32xf32> to vector<8x32xf32>
    %24 = arith.addf %22, %23 : vector<8x32xf32>
    %25 = vector.extract_strided_slice %3 {offsets = [1, 0], sizes = [1, 32], strides = [1, 1]} : vector<3x32xf32> to vector<1x32xf32>
    %cst_16 = arith.constant 0.000000e+00 : f32
    %26 = vector.broadcast %cst_16 : f32 to vector<8x32xf32>
    %27 = arith.maximumf %24, %26 : vector<8x32xf32>
    %28 = math.absf %24 : vector<8x32xf32>
    %cst_17 = arith.constant 0.000000e+00 : f32
    %29 = vector.broadcast %cst_17 : f32 to vector<8x32xf32>
    %30 = arith.subf %29, %28 : vector<8x32xf32>
    %31 = math.exp %30 : vector<8x32xf32>
    %32 = math.log1p %31 : vector<8x32xf32>
    %33 = arith.addf %27, %32 : vector<8x32xf32>
    %34 = vector.broadcast %25 : vector<1x32xf32> to vector<8x32xf32>
    %35 = arith.mulf %34, %33 : vector<8x32xf32>
    %c0_18 = arith.constant 0 : index
    %c0_19 = arith.constant 0 : index
    %36 = vector.load %arg8[%c0_18, %c0_19] : memref<32x32xf32, #tpu.memory_space<vmem>>, vector<32x32xf32>
    %c0_20 = arith.constant 0 : index
    %c0_21 = arith.constant 0 : index
    %37 = vector.load %arg9[%c0_20, %c0_21] : memref<1x32xf32, #tpu.memory_space<vmem>>, vector<1x32xf32>
    %cst_22 = arith.constant dense<0.000000e+00> : vector<8x32xf32>
    %38 = tpu.matmul %35, %36, %cst_22 {dimension_numbers = #tpu.dot_dimension_numbers<[1], [0], [0], [1], [0, 0, 1, 1], [], []>} : vector<8x32xf32>, vector<32x32xf32>, vector<8x32xf32> -> vector<8x32xf32>
    %39 = vector.broadcast %37 : vector<1x32xf32> to vector<8x32xf32>
    %40 = arith.addf %38, %39 : vector<8x32xf32>
    %41 = vector.extract_strided_slice %3 {offsets = [2, 0], sizes = [1, 32], strides = [1, 1]} : vector<3x32xf32> to vector<1x32xf32>
    %cst_23 = arith.constant 0.000000e+00 : f32
    %42 = vector.broadcast %cst_23 : f32 to vector<8x32xf32>
    %43 = arith.maximumf %40, %42 : vector<8x32xf32>
    %44 = math.absf %40 : vector<8x32xf32>
    %cst_24 = arith.constant 0.000000e+00 : f32
    %45 = vector.broadcast %cst_24 : f32 to vector<8x32xf32>
    %46 = arith.subf %45, %44 : vector<8x32xf32>
    %47 = math.exp %46 : vector<8x32xf32>
    %48 = math.log1p %47 : vector<8x32xf32>
    %49 = arith.addf %43, %48 : vector<8x32xf32>
    %50 = vector.broadcast %41 : vector<1x32xf32> to vector<8x32xf32>
    %51 = arith.mulf %50, %49 : vector<8x32xf32>
    %c0_25 = arith.constant 0 : index
    %c0_26 = arith.constant 0 : index
    %52 = vector.load %arg10[%c0_25, %c0_26] : memref<32x128xf32, #tpu.memory_space<vmem>>, vector<32x128xf32>
    %c0_27 = arith.constant 0 : index
    %c0_28 = arith.constant 0 : index
    %53 = vector.load %arg11[%c0_27, %c0_28] : memref<1x128xf32, #tpu.memory_space<vmem>>, vector<1x128xf32>
    %cst_29 = arith.constant dense<0.000000e+00> : vector<8x128xf32>
    %54 = tpu.matmul %51, %52, %cst_29 {dimension_numbers = #tpu.dot_dimension_numbers<[1], [0], [0], [1], [0, 0, 1, 1], [], []>} : vector<8x32xf32>, vector<32x128xf32>, vector<8x128xf32> -> vector<8x128xf32>
    %55 = vector.broadcast %53 : vector<1x128xf32> to vector<8x128xf32>
    %56 = arith.addf %54, %55 : vector<8x128xf32>
    %c0_30 = arith.constant 0 : index
    %c0_31 = arith.constant 0 : index
    %c0_32 = arith.constant 0 : index
    %57 = vector.load %arg12[%c0_30, %c0_31, %c0_32] : memref<1x8x128xf32, #tpu.memory_space<vmem>>, vector<1x8x128xf32>
    %58 = vector.shape_cast %57 : vector<1x8x128xf32> to vector<8x128xf32>
    %59 = vector.shape_cast %56 : vector<8x128xf32> to vector<1x8x128xf32>
    tpu.vector_store %arg12[%c0_30, %c0_31, %c0_32], %59 {strides = array<i32>} : memref<1x8x128xf32, #tpu.memory_space<vmem>>, vector<1x8x128xf32>,
    return
  }
  func.func @transform_0(%arg0: i32, %arg1: i32) -> (i32, i32, i32) {
    %c0_i32 = arith.constant 0 : i32
    %c0_i32_0 = arith.constant 0 : i32
    return %arg0, %arg1, %c0_i32 : i32, i32, i32
  }
  func.func @transform_1(%arg0: i32, %arg1: i32) -> (i32, i32, i32) {
    %c0_i32 = arith.constant 0 : i32
    %c0_i32_0 = arith.constant 0 : i32
    %c0_i32_1 = arith.constant 0 : i32
    return %arg0, %c0_i32, %c0_i32_0 : i32, i32, i32
  }
  func.func @transform_2(%arg0: i32, %arg1: i32) -> (i32, i32) {
    %c0_i32 = arith.constant 0 : i32
    %c0_i32_0 = arith.constant 0 : i32
    %c0_i32_1 = arith.constant 0 : i32
    return %c0_i32, %c0_i32_0 : i32, i32
  }
  func.func @transform_3(%arg0: i32, %arg1: i32) -> (i32, i32) {
    %c0_i32 = arith.constant 0 : i32
    %c0_i32_0 = arith.constant 0 : i32
    %c0_i32_1 = arith.constant 0 : i32
    return %c0_i32, %c0_i32_0 : i32, i32
  }
  func.func @transform_4(%arg0: i32, %arg1: i32) -> (i32, i32) {
    %c0_i32 = arith.constant 0 : i32
    %c0_i32_0 = arith.constant 0 : i32
    %c0_i32_1 = arith.constant 0 : i32
    return %c0_i32, %c0_i32_0 : i32, i32
  }
  func.func @transform_5(%arg0: i32, %arg1: i32) -> (i32, i32) {
    %c0_i32 = arith.constant 0 : i32
    %c0_i32_0 = arith.constant 0 : i32
    %c0_i32_1 = arith.constant 0 : i32
    return %c0_i32, %c0_i32_0 : i32, i32
  }
  func.func @transform_6(%arg0: i32, %arg1: i32) -> (i32, i32) {
    %c0_i32 = arith.constant 0 : i32
    %c0_i32_0 = arith.constant 0 : i32
    %c0_i32_1 = arith.constant 0 : i32
    return %c0_i32, %c0_i32_0 : i32, i32
  }
  func.func @transform_7(%arg0: i32, %arg1: i32) -> (i32, i32) {
    %c0_i32 = arith.constant 0 : i32
    %c0_i32_0 = arith.constant 0 : i32
    %c0_i32_1 = arith.constant 0 : i32
    return %c0_i32, %c0_i32_0 : i32, i32
  }
  func.func @transform_8(%arg0: i32, %arg1: i32) -> (i32, i32) {
    %c0_i32 = arith.constant 0 : i32
    %c0_i32_0 = arith.constant 0 : i32
    %c0_i32_1 = arith.constant 0 : i32
    return %c0_i32, %c0_i32_0 : i32, i32
  }
  func.func @transform_9(%arg0: i32, %arg1: i32) -> (i32, i32) {
    %c0_i32 = arith.constant 0 : i32
    %c0_i32_0 = arith.constant 0 : i32
    %c0_i32_1 = arith.constant 0 : i32
    return %c0_i32, %c0_i32_0 : i32, i32
  }
  func.func @transform_10(%arg0: i32, %arg1: i32) -> (i32, i32, i32) {
    %c0_i32 = arith.constant 0 : i32
    %c0_i32_0 = arith.constant 0 : i32
    return %arg0, %arg1, %c0_i32 : i32, i32, i32
  }
}

</mosaic_0001>

<llo_original>
// kernel: tpu_custom_call.1
$region0: #{tpu_custom_call.1}
  #allocation0 [shape = 'u32[]', space=smem, size = 0x4, offset = 0x4, fixed_abs, tag = 'smem constant byte address 0x4 - core index']
  #allocation1 [shape = 'u32[72,128]{1,0:T(1,128)}', space=vmem, size = 0x9000, scoped, tag = 'internal scratch']
  %s0 = inlined_call_operand.vmem [shape: f32[2,8,5], index: 0, kind: input, shape index: {}]
  %s1 = inlined_call_operand.vmem [shape: f32[2,3,32], index: 1, kind: input, shape index: {}]
  %s2 = inlined_call_operand.vmem [shape: f32[5,32], index: 2, kind: input, shape index: {}]
  %s3 = inlined_call_operand.vmem [shape: f32[1,32], index: 3, kind: input, shape index: {}]
  %s4 = inlined_call_operand.hbm [shape: f32[32,32], index: 4, kind: input, shape index: {}]
  %s5 = inlined_call_operand.vmem [shape: f32[1,32], index: 5, kind: input, shape index: {}]
  %s6 = inlined_call_operand.hbm [shape: f32[32,32], index: 6, kind: input, shape index: {}]
  %s7 = inlined_call_operand.vmem [shape: f32[1,32], index: 7, kind: input, shape index: {}]
  %s8 = inlined_call_operand.hbm [shape: f32[32,128], index: 8, kind: input, shape index: {}]
  %s9 = inlined_call_operand.vmem [shape: f32[1,128], index: 9, kind: input, shape index: {}]
  %s10 = inlined_call_operand.hbm [shape: f32[2,8,128], index: 10, kind: output, shape index: {}]
  %s11 = sld [smem:[#allocation0]]
  $region85: #{tpu_custom_call.1} parent=0
    _
  %s13 = ssub.s32 1, %s11
  %s14 = scalar_select 0, %s13, %s11
  $region1: #{tpu_custom_call.1} parent=0
    #allocation2 [shape = 'u8[16384]{0}', space=vmem, size = 0x4000, scoped, tag = 'input window, operand 4, single buffered']
    #allocation3 [shape = 's32[2]{0}', space=sflag, size = 0x8, scoped, tag = 'scoped memory for tpu_custom_call.1']
    #allocation4 [shape = 's32[2]{0}', space=sflag, size = 0x8, scoped, tag = 'scoped memory for tpu_custom_call.1']
    #allocation5 [shape = 'u8[16384]{0}', space=vmem, size = 0x4000, scoped, tag = 'input window, operand 6, single buffered']
    #allocation6 [shape = 's32[1]{0}', space=sflag, size = 0x4, scoped, tag = 'scoped memory for tpu_custom_call.1']
    #allocation7 [shape = 'u8[16384]{0}', space=vmem, size = 0x4000, scoped, tag = 'input window, operand 8, single buffered']
    #allocation8 [shape = 'u8[8192]{0}', space=vmem, size = 0x2000, scoped, tag = 'output window, operand 0']
    %15 = vsyncpa [#allocation3], 0
    %16 = vsyncpa [#allocation6], 0
    %17 = vsyncpa [#allocation4], 0
    %s18 = scalar_lea.sflag [#allocation4], 1
    %19 = vsyncpa %s18, 0
    loop: start=0, step=1, limit=4
    $region2: #{tpu_custom_call.1} parent=1 // loop_pre_header
      _
    $region3: #{tpu_custom_call.1} parent=1 // loop_header
      %s21 = sphi 0, %s25
      %p22 = scmp.ge.s32.totalorder %s21, 4
      %s28 = sphi 0, %s40
      %s29 = sphi 0, %s36
      %s30 = sphi 0, %s28
      %s31 = sphi 0, %s29
      %s32 = sphi 0, %s30
      %s33 = sphi 0, %s31
      %s45 = sphi 0, %s47
      %s48 = sphi 0, %s45
      %s49 = sphi 0, %s48
      %s65 = sphi 0, %s49
      %s71 = sphi 0, %s73
      %s74 = sphi 0, %s71
      %s75 = sphi 0, %s74
      %s91 = sphi 0, %s75
      %s95 = sphi 0, %s95
      %s97 = sphi 0, %s95
      %s98 = sphi 0, %s97
      %s112 = sphi 0, %s98
      %s116 = sphi 0, %s116
      %s118 = sphi 0, %s116
      %s119 = sphi 0, %s118
      %s133 = sphi 0, %s119
      %s137 = sphi 0, %s137
      %s139 = sphi 0, %s137
      %s140 = sphi 0, %s139
      %s154 = sphi 0, %s140
      %s158 = sphi 0, %s158
      %s160 = sphi 0, %s158
      %s161 = sphi 0, %s160
      %s175 = sphi 0, %s161
      %s179 = sphi 0, %s179
      %s181 = sphi 0, %s179
      %s182 = sphi 0, %s181
      %s196 = sphi 0, %s182
      %s200 = sphi 0, %s200
      %s202 = sphi 0, %s200
      %s203 = sphi 0, %s202
      %s217 = sphi 0, %s203
      %s221 = sphi 0, %s221
      %s223 = sphi 0, %s221
      %s224 = sphi 0, %s223
      %s238 = sphi 0, %s224
      %s242 = sphi 0, %s242
      %s244 = sphi 0, %s242
      %s245 = sphi 0, %s244
      %s259 = sphi 0, %s245
      %s267 = sphi 0, %s269
      %s270 = sphi 0, %s267
      %s271 = sphi 0, %s270
      %s287 = sphi 0, %s271
    $region4: #{tpu_custom_call.1} parent=1 // loop_header_branch
      %24 = sbr.rel (%p22) target = $region8
    $region5: #{tpu_custom_call.1} parent=1 // loop_body
      %s26 = ssub.s32 %s21, 1
      %s27 = ssub.s32 %s21, 2
      %s34 = sadd.s32 1, %s29
      %p35 = scmp.ge.s32.totalorder %s34, 1
      %s36 = scalar_select %p35, 0, %s34
      %s37 = sadd.s32 1, %s28
      %s38 = scalar_select %p35, %s37, %s28
      %p39 = scmp.ge.s32.totalorder %s38, 2
      %s40 = scalar_select %p39, 0, %s38
      %s41 = ssub.s32 %s28, %s40
      %s42 = ssub.s32 %s29, %s36
      %s43 = sor.u32 %s41, %s42
      %p44 = scmp.eq.s32.totalorder %s43, 0
      %s46 = sadd.s32 %s45, 1
      %s47 = scalar_select %p44, %s45, %s46
      %p50 = pneg %p44
      %p51 = scmp.eq.s32.totalorder %s21, 1
      %p52 = por %p50, %p51
      %p53 = scmp.ne.s32.totalorder %s45, %s48
      %p54 = scmp.eq.s32.totalorder %s21, 0
      %p55 = por %p53, %p54
      %p56 = scmp.ne.s32.totalorder %s45, %s48
      %p57 = scmp.eq.s32.totalorder %s26, 1
      %p58 = por %p56, %p57
      %p59 = scmp.ne.s32.totalorder %s48, %s49
      %p60 = scmp.eq.s32.totalorder %s26, 0
      %p61 = por %p59, %p60
      %p62 = scmp.ne.s32.totalorder %s48, %s49
      %p63 = scmp.eq.s32.totalorder %s27, 1
      %p64 = por %p62, %p63
      %p66 = scmp.ne.s32.totalorder %s49, %s65
      %p67 = scmp.eq.s32.totalorder %s27, 0
      %p68 = por %p66, %p67
      %s69 = ssub.s32 %s28, %s40
      %p70 = scmp.eq.s32.totalorder %s69, 0
      %s72 = sadd.s32 %s71, 1
      %s73 = scalar_select %p70, %s71, %s72
      %p76 = pneg %p70
      %p77 = scmp.eq.s32.totalorder %s21, 1
      %p78 = por %p76, %p77
      %p79 = scmp.ne.s32.totalorder %s71, %s74
      %p80 = scmp.eq.s32.totalorder %s21, 0
      %p81 = por %p79, %p80
      %p82 = scmp.ne.s32.totalorder %s71, %s74
      %p83 = scmp.eq.s32.totalorder %s26, 1
      %p84 = por %p82, %p83
      %p85 = scmp.ne.s32.totalorder %s74, %s75
      %p86 = scmp.eq.s32.totalorder %s26, 0
      %p87 = por %p85, %p86
      %p88 = scmp.ne.s32.totalorder %s74, %s75
      %p89 = scmp.eq.s32.totalorder %s27, 1
      %p90 = por %p88, %p89
      %p92 = scmp.ne.s32.totalorder %s75, %s91
      %p93 = scmp.eq.s32.totalorder %s27, 0
      %p94 = por %p92, %p93
      %s96 = sadd.s32 %s95, 1
      %p99 = scmp.eq.s32.totalorder %s21, 1
      %p100 = scmp.ne.s32.totalorder %s95, %s97
      %p101 = scmp.eq.s32.totalorder %s21, 0
      %p102 = por %p100, %p101
      %p103 = scmp.ne.s32.totalorder %s95, %s97
      %p104 = scmp.eq.s32.totalorder %s26, 1
      %p105 = por %p103, %p104
      %p106 = scmp.ne.s32.totalorder %s97, %s98
      %p107 = scmp.eq.s32.totalorder %s26, 0
      %p108 = por %p106, %p107
      %p109 = scmp.ne.s32.totalorder %s97, %s98
      %p110 = scmp.eq.s32.totalorder %s27, 1
      %p111 = por %p109, %p110
      %p113 = scmp.ne.s32.totalorder %s98, %s112
      %p114 = scmp.eq.s32.totalorder %s27, 0
      %p115 = por %p113, %p114
      %s117 = sadd.s32 %s116, 1
      %p120 = scmp.eq.s32.totalorder %s21, 1
      %p121 = scmp.ne.s32.totalorder %s116, %s118
      %p122 = scmp.eq.s32.totalorder %s21, 0
      %p123 = por %p121, %p122
      %p124 = scmp.ne.s32.totalorder %s116, %s118
      %p125 = scmp.eq.s32.totalorder %s26, 1
      %p126 = por %p124, %p125
      %p127 = scmp.ne.s32.totalorder %s118, %s119
      %p128 = scmp.eq.s32.totalorder %s26, 0
      %p129 = por %p127, %p128
      %p130 = scmp.ne.s32.totalorder %s118, %s119
      %p131 = scmp.eq.s32.totalorder %s27, 1
      %p132 = por %p130, %p131
      %p134 = scmp.ne.s32.totalorder %s119, %s133
      %p135 = scmp.eq.s32.totalorder %s27, 0
      %p136 = por %p134, %p135
      %s138 = sadd.s32 %s137, 1
      %p141 = scmp.eq.s32.totalorder %s21, 1
      %p142 = scmp.ne.s32.totalorder %s137, %s139
      %p143 = scmp.eq.s32.totalorder %s21, 0
      %p144 = por %p142, %p143
      %p145 = scmp.ne.s32.totalorder %s137, %s139
      %p146 = scmp.eq.s32.totalorder %s26, 1
      %p147 = por %p145, %p146
      %p148 = scmp.ne.s32.totalorder %s139, %s140
      %p149 = scmp.eq.s32.totalorder %s26, 0
      %p150 = por %p148, %p149
      %p151 = scmp.ne.s32.totalorder %s139, %s140
      %p152 = scmp.eq.s32.totalorder %s27, 1
      %p153 = por %p151, %p152
      %p155 = scmp.ne.s32.totalorder %s140, %s154
      %p156 = scmp.eq.s32.totalorder %s27, 0
      %p157 = por %p155, %p156
      %s159 = sadd.s32 %s158, 1
      %p162 = scmp.eq.s32.totalorder %s21, 1
      %p163 = scmp.ne.s32.totalorder %s158, %s160
      %p164 = scmp.eq.s32.totalorder %s21, 0
      %p165 = por %p163, %p164
      %p166 = scmp.ne.s32.totalorder %s158, %s160
      %p167 = scmp.eq.s32.totalorder %s26, 1
      %p168 = por %p166, %p167
      %p169 = scmp.ne.s32.totalorder %s160, %s161
      %p170 = scmp.eq.s32.totalorder %s26, 0
      %p171 = por %p169, %p170
      %p172 = scmp.ne.s32.totalorder %s160, %s161
      %p173 = scmp.eq.s32.totalorder %s27, 1
      %p174 = por %p172, %p173
      %p176 = scmp.ne.s32.totalorder %s161, %s175
      %p177 = scmp.eq.s32.totalorder %s27, 0
      %p178 = por %p176, %p177
      %s180 = sadd.s32 %s179, 1
      %p183 = scmp.eq.s32.totalorder %s21, 1
      %p184 = scmp.ne.s32.totalorder %s179, %s181
      %p185 = scmp.eq.s32.totalorder %s21, 0
      %p186 = por %p184, %p185
      %p187 = scmp.ne.s32.totalorder %s179, %s181
      %p188 = scmp.eq.s32.totalorder %s26, 1
      %p189 = por %p187, %p188
      %p190 = scmp.ne.s32.totalorder %s181, %s182
      %p191 = scmp.eq.s32.totalorder %s26, 0
      %p192 = por %p190, %p191
      %p193 = scmp.ne.s32.totalorder %s181, %s182
      %p194 = scmp.eq.s32.totalorder %s27, 1
      %p195 = por %p193, %p194
      %p197 = scmp.ne.s32.totalorder %s182, %s196
      %p198 = scmp.eq.s32.totalorder %s27, 0
      %p199 = por %p197, %p198
      %s201 = sadd.s32 %s200, 1
      %p204 = scmp.eq.s32.totalorder %s21, 1
      %p205 = scmp.ne.s32.totalorder %s200, %s202
      %p206 = scmp.eq.s32.totalorder %s21, 0
      %p207 = por %p205, %p206
      %p208 = scmp.ne.s32.totalorder %s200, %s202
      %p209 = scmp.eq.s32.totalorder %s26, 1
      %p210 = por %p208, %p209
      %p211 = scmp.ne.s32.totalorder %s202, %s203
      %p212 = scmp.eq.s32.totalorder %s26, 0
      %p213 = por %p211, %p212
      %p214 = scmp.ne.s32.totalorder %s202, %s203
      %p215 = scmp.eq.s32.totalorder %s27, 1
      %p216 = por %p214, %p215
      %p218 = scmp.ne.s32.totalorder %s203, %s217
      %p219 = scmp.eq.s32.totalorder %s27, 0
      %p220 = por %p218, %p219
      %s222 = sadd.s32 %s221, 1
      %p225 = scmp.eq.s32.totalorder %s21, 1
      %p226 = scmp.ne.s32.totalorder %s221, %s223
      %p227 = scmp.eq.s32.totalorder %s21, 0
      %p228 = por %p226, %p227
      %p229 = scmp.ne.s32.totalorder %s221, %s223
      %p230 = scmp.eq.s32.totalorder %s26, 1
      %p231 = por %p229, %p230
      %p232 = scmp.ne.s32.totalorder %s223, %s224
      %p233 = scmp.eq.s32.totalorder %s26, 0
      %p234 = por %p232, %p233
      %p235 = scmp.ne.s32.totalorder %s223, %s224
      %p236 = scmp.eq.s32.totalorder %s27, 1
      %p237 = por %p235, %p236
      %p239 = scmp.ne.s32.totalorder %s224, %s238
      %p240 = scmp.eq.s32.totalorder %s27, 0
      %p241 = por %p239, %p240
      %s243 = sadd.s32 %s242, 1
      %p246 = scmp.eq.s32.totalorder %s21, 1
      %p247 = scmp.ne.s32.totalorder %s242, %s244
      %p248 = scmp.eq.s32.totalorder %s21, 0
      %p249 = por %p247, %p248
      %p250 = scmp.ne.s32.totalorder %s242, %s244
      %p251 = scmp.eq.s32.totalorder %s26, 1
      %p252 = por %p250, %p251
      %p253 = scmp.ne.s32.totalorder %s244, %s245
      %p254 = scmp.eq.s32.totalorder %s26, 0
      %p255 = por %p253, %p254
      %p256 = scmp.ne.s32.totalorder %s244, %s245
      %p257 = scmp.eq.s32.totalorder %s27, 1
      %p258 = por %p256, %p257
      %p260 = scmp.ne.s32.totalorder %s245, %s259
      %p261 = scmp.eq.s32.totalorder %s27, 0
      %p262 = por %p260, %p261
      %s263 = ssub.s32 %s28, %s40
      %s264 = ssub.s32 %s29, %s36
      %s265 = sor.u32 %s263, %s264
      %p266 = scmp.eq.s32.totalorder %s265, 0
      %s268 = sadd.s32 %s267, 1
      %s269 = scalar_select %p266, %s267, %s268
      %p272 = pneg %p266
      %p273 = scmp.eq.s32.totalorder %s21, 1
      %p274 = por %p272, %p273
      %p275 = scmp.ne.s32.totalorder %s267, %s270
      %p276 = scmp.eq.s32.totalorder %s21, 0
      %p277 = por %p275, %p276
      %p278 = scmp.ne.s32.totalorder %s267, %s270
      %p279 = scmp.eq.s32.totalorder %s26, 1
      %p280 = por %p278, %p279
      %p281 = scmp.ne.s32.totalorder %s270, %s271
      %p282 = scmp.eq.s32.totalorder %s26, 0
      %p283 = por %p281, %p282
      %p284 = scmp.ne.s32.totalorder %s270, %s271
      %p285 = scmp.eq.s32.totalorder %s27, 1
      %p286 = por %p284, %p285
      %p288 = scmp.ne.s32.totalorder %s271, %s287
      %p289 = scmp.eq.s32.totalorder %s27, 0
      %p290 = por %p288, %p289
      %p291 = scmp.le.s32.totalorder 1, %s21
      %p292 = scmp.lt.s32.totalorder %s21, 3
      %p293 = pnand %p291, %p292
      %p294 = pneg %p293
      // Predicated region
      $region9: #{tpu_custom_call.1} parent=5 // pred_check
        _
      $region10: #{tpu_custom_call.1} parent=5 // pred_check_branch
        %296 = sbr.rel (%p293) target = $region12
      $region11: #{tpu_custom_call.1} parent=5 // pred_region
        %s297 = ssub.s32 %s21, 1
        // Predicated region
        $region13: #{tpu_custom_call.1} parent=11 // pred_check
          %p298 = pneg %p108
        $region14: #{tpu_custom_call.1} parent=11 // pred_check_branch
          %300 = sbr.rel (%p298) target = $region16
        $region15: #{tpu_custom_call.1} parent=11 // pred_region
          _
        $region16: #{tpu_custom_call.1} parent=11 // pred_fallthru
          _
        // Predicated region
        $region17: #{tpu_custom_call.1} parent=11 // pred_check
          %p301 = pneg %p129
        $region18: #{tpu_custom_call.1} parent=11 // pred_check_branch
          %303 = sbr.rel (%p301) target = $region20
        $region19: #{tpu_custom_call.1} parent=11 // pred_region
          _
        $region20: #{tpu_custom_call.1} parent=11 // pred_fallthru
          _
        // Predicated region
        $region21: #{tpu_custom_call.1} parent=11 // pred_check
          %p304 = pneg %p150
        $region22: #{tpu_custom_call.1} parent=11 // pred_check_branch
          %306 = sbr.rel (%p304) target = $region24
        $region23: #{tpu_custom_call.1} parent=11 // pred_region
          %308 = vsyncadd [#allocation3], 0
          %s309 = sshll.u32 %s4, 4
          %s310 = int_to_ptr.hbm [resolvable:$true] %s309
          %s311 = sshll.u32 [#allocation2], 4
          %s312 = int_to_ptr.vmem [resolvable:$true] %s311
          %317 = dma.hbm_to_vmem [thread:$0]  %s310, 512, %s312, [#allocation3], 128, 128, 8
        $region24: #{tpu_custom_call.1} parent=11 // pred_fallthru
          _
        // Predicated region
        $region25: #{tpu_custom_call.1} parent=11 // pred_check
          %p318 = pneg %p171
        $region26: #{tpu_custom_call.1} parent=11 // pred_check_branch
          %320 = sbr.rel (%p318) target = $region28
        $region27: #{tpu_custom_call.1} parent=11 // pred_region
          _
        $region28: #{tpu_custom_call.1} parent=11 // pred_fallthru
          _
        // Predicated region
        $region29: #{tpu_custom_call.1} parent=11 // pred_check
          %p321 = pneg %p192
        $region30: #{tpu_custom_call.1} parent=11 // pred_check_branch
          %323 = sbr.rel (%p321) target = $region32
        $region31: #{tpu_custom_call.1} parent=11 // pred_region
          %325 = vsyncadd [#allocation6], 0
          %s326 = sshll.u32 %s6, 4
          %s327 = int_to_ptr.hbm [resolvable:$true] %s326
          %s328 = sshll.u32 [#allocation5], 4
          %s329 = int_to_ptr.vmem [resolvable:$true] %s328
          %334 = dma.hbm_to_vmem [thread:$0]  %s327, 512, %s329, [#allocation6], 128, 128, 8
        $region32: #{tpu_custom_call.1} parent=11 // pred_fallthru
          _
        // Predicated region
        $region33: #{tpu_custom_call.1} parent=11 // pred_check
          %p335 = pneg %p213
        $region34: #{tpu_custom_call.1} parent=11 // pred_check_branch
          %337 = sbr.rel (%p335) target = $region36
        $region35: #{tpu_custom_call.1} parent=11 // pred_region
          _
        $region36: #{tpu_custom_call.1} parent=11 // pred_fallthru
          _
        // Predicated region
        $region37: #{tpu_custom_call.1} parent=11 // pred_check
          %p338 = pneg %p234
        $region38: #{tpu_custom_call.1} parent=11 // pred_check_branch
          %340 = sbr.rel (%p338) target = $region40
        $region39: #{tpu_custom_call.1} parent=11 // pred_region
          %342 = vsyncadd [#allocation6], 0
          %s343 = sshll.u32 %s8, 4
          %s344 = int_to_ptr.hbm [resolvable:$true] %s343
          %s345 = sshll.u32 [#allocation7], 4
          %s346 = int_to_ptr.vmem [resolvable:$true] %s345
          %351 = dma.hbm_to_vmem [thread:$0]  %s344, 512, %s346, [#allocation6], 128, 128, 8
        $region40: #{tpu_custom_call.1} parent=11 // pred_fallthru
          _
        // Predicated region
        $region41: #{tpu_custom_call.1} parent=11 // pred_check
          %p352 = pneg %p255
        $region42: #{tpu_custom_call.1} parent=11 // pred_check_branch
          %354 = sbr.rel (%p352) target = $region44
        $region43: #{tpu_custom_call.1} parent=11 // pred_region
          _
        $region44: #{tpu_custom_call.1} parent=11 // pred_fallthru
          _
      $region12: #{tpu_custom_call.1} parent=5 // pred_fallthru
        _
      %p355 = scmp.lt.s32.totalorder %s21, 2
      // Predicated region
      $region45: #{tpu_custom_call.1} parent=5 // pred_check
        %p356 = pneg %p355
      $region46: #{tpu_custom_call.1} parent=5 // pred_check_branch
        %358 = sbr.rel (%p356) target = $region48
      $region47: #{tpu_custom_call.1} parent=5 // pred_region
        // Predicated region
        $region49: #{tpu_custom_call.1} parent=47 // pred_check
          %p359 = pneg %p55
        $region50: #{tpu_custom_call.1} parent=47 // pred_check_branch
          %361 = sbr.rel (%p359) target = $region52
        $region51: #{tpu_custom_call.1} parent=47 // pred_region
          %p362 = scmp.lt.s32.totalorder %s28, 1
          %s363 = scalar_select %p362, %s28, 1
          %p364 = scmp.lt.s32.totalorder %s29, 0
          %s365 = scalar_select %p364, %s29, 0
          %s366 = sadd.s32 %s365, %s363
          %s367 = smul.addr %s366, 8
          %s368 = scalar_lea.vmem %s0, %s367
        $region52: #{tpu_custom_call.1} parent=47 // pred_fallthru
          _
        // Predicated region
        $region53: #{tpu_custom_call.1} parent=47 // pred_check
          %p369 = pneg %p81
        $region54: #{tpu_custom_call.1} parent=47 // pred_check_branch
          %371 = sbr.rel (%p369) target = $region56
        $region55: #{tpu_custom_call.1} parent=47 // pred_region
          %p372 = scmp.lt.s32.totalorder %s28, 1
          %s373 = scalar_select %p372, %s28, 1
          %s374 = smul.addr %s373, 4
          %s375 = scalar_lea.vmem %s1, %s374
        $region56: #{tpu_custom_call.1} parent=47 // pred_fallthru
          _
      $region48: #{tpu_custom_call.1} parent=5 // pred_fallthru
        _
      %p376 = scmp.le.s32.totalorder 1, %s21
      %p377 = scmp.lt.s32.totalorder %s21, 3
      %p378 = pnand %p376, %p377
      %p379 = pneg %p378
      // Predicated region
      $region57: #{tpu_custom_call.1} parent=5 // pred_check
        _
      $region58: #{tpu_custom_call.1} parent=5 // pred_check_branch
        %381 = sbr.rel (%p378) target = $region60
      $region59: #{tpu_custom_call.1} parent=5 // pred_region
        %s382 = ssub.s32 %s21, 1
        // Predicated region
        $region61: #{tpu_custom_call.1} parent=59 // pred_check
          %p383 = pneg %p150
        $region62: #{tpu_custom_call.1} parent=59 // pred_check_branch
          %385 = sbr.rel (%p383) target = $region64
        $region63: #{tpu_custom_call.1} parent=59 // pred_region
          %387 = dma.done [#allocation3], 512
        $region64: #{tpu_custom_call.1} parent=59 // pred_fallthru
          _
        // Predicated region
        $region65: #{tpu_custom_call.1} parent=59 // pred_check
          %p388 = pneg %p192
        $region66: #{tpu_custom_call.1} parent=59 // pred_check_branch
          %390 = sbr.rel (%p388) target = $region68
        $region67: #{tpu_custom_call.1} parent=59 // pred_region
          %392 = dma.done [#allocation6], 512
        $region68: #{tpu_custom_call.1} parent=59 // pred_fallthru
          _
        // Predicated region
        $region69: #{tpu_custom_call.1} parent=59 // pred_check
          %p393 = pneg %p234
        $region70: #{tpu_custom_call.1} parent=59 // pred_check_branch
          %395 = sbr.rel (%p393) target = $region72
        $region71: #{tpu_custom_call.1} parent=59 // pred_region
          %397 = dma.done [#allocation6], 512
        $region72: #{tpu_custom_call.1} parent=59 // pred_fallthru
          _
        %p398 = scmp.lt.s32.totalorder %s30, 1
        %s399 = scalar_select %p398, %s30, 1
        %p400 = scmp.lt.s32.totalorder %s31, 0
        %s401 = scalar_select %p400, %s31, 0
        %s402 = sadd.s32 %s401, %s399
        %s403 = smul.addr %s402, 8
        %s404 = scalar_lea.vmem %s0, %s403
        %p405 = pneg %p61
        %p406 = pneg %p58
        %p407 = scmp.lt.s32.totalorder %s30, 1
        %s408 = scalar_select %p407, %s30, 1
        %s409 = smul.addr %s408, 4
        %s410 = scalar_lea.vmem %s1, %s409
        %p411 = pneg %p87
        %p412 = pneg %p84
        %p413 = pneg %p108
        %p414 = pneg %p105
        %p415 = pneg %p129
        %p416 = pneg %p126
        %p417 = pneg %p150
        %p418 = pneg %p147
        %p419 = pneg %p171
        %p420 = pneg %p168
        %p421 = pneg %p192
        %p422 = pneg %p189
        %p423 = pneg %p213
        %p424 = pneg %p210
        %p425 = pneg %p234
        %p426 = pneg %p231
        %p427 = pneg %p255
        %p428 = pneg %p252
        %p429 = pneg %p283
        %p430 = pneg %p280
        %s431 = sand.u32 %s270, 1
        %s432 = scalar_lea.sflag [#allocation4], %s431
        %s433 = sand.u32 %s270, 1
        %s434 = smul.addr %s433, 8
        %s435 = scalar_lea.vmem [#allocation8], %s434
        %p436 = scmp.lt.s32.totalorder %s30, 1
        %s437 = scalar_select %p436, %s30, 1
        %p438 = scmp.lt.s32.totalorder %s31, 0
        %s439 = scalar_select %p438, %s31, 0
        %s440 = sadd.s32 %s439, %s437
        %s441 = smul.addr %s440, 8
        %s442 = scalar_lea.vmem %s0, %s441
        %p443 = scmp.lt.s32.totalorder %s30, 1
        %s444 = scalar_select %p443, %s30, 1
        %s445 = smul.addr %s444, 4
        %s446 = scalar_lea.vmem %s1, %s445
        %v447 = vld [vmem:[%s442] sm:$0xff]
        %v448 = vld [vmem:[%s446] sm:$0x7]
        %v449 = vld [vmem:[%s2] sm:$0x1f]
        %v450 = vld [vmem:[%s3] sm:$0x1]
        %v452 = vperm.slane %v450, 0
        %vm454 = vcmask 39936
        %v456 = vsel %vm454, %v447, 0
        %vm458 = vcmask 1044480
        %v460 = vsel %vm458, %v449, 0
        %462 = vmatpush.msra.mxu0 0.0
        %463 = vmatpush.msra.mxu0 0.0
        %464 = vmatpush.msra.mxu0 0.0
        %465 = vmatpush.msra.mxu0 0.0
        %466 = vmatpush.msra.mxu0 0.0
        %467 = vmatpush.msra.mxu0 0.0
        %468 = vmatpush.msra.mxu0 0.0
        %469 = vmatpush.msra.mxu0 0.0
        %470 = vmatpush.msra.mxu0 0.0
        %471 = vmatpush.msra.mxu0 0.0
        %472 = vmatpush.msra.mxu0 0.0
        %473 = vmatpush.msra.mxu0 0.0
        %474 = vmatpush.msra.mxu0 0.0
        %475 = vmatpush.msra.mxu0 0.0
        %476 = vmatpush.msra.mxu0 0.0
        %477 = vmatpush.msra.mxu0 %v460
        %478 = vmatmul.f32.gmra.mxu0 %v456
        %v479 = vpop.f32.mrf.mxu0
        %v480 = vadd.f32 %v452, %v479
        %481 = vdwg.mxu0
        %v482 = vmax.f32 %v480, 0.0
        %v483 = vand.u32 2147483647, %v480
        %v484 = vsub.f32 0.0, %v483
        %v485 = vmul.f32 %v484, 1.442695
        %v486 = vpow.pop %v485
        %v487 = vadd.f32 %v486, 1.0
        %v488 = vlog2.pop %v487
        %v489 = vmul.f32 %v488, 0.6931472
        %v490 = vmul.f32 -0.5, %v486
        %v491 = vadd.f32 %v490, 1.0
        %v492 = vmul.f32 %v491, %v486
        %v493 = vand.u32 2147483647, %v486
        %vm494 = vcmp.lt.f32.partialorder %v493, 0.0004427343
        %v495 = vsel %vm494, %v492, %v489
        %v496 = vadd.f32 %v482, %v495
        %v497 = vperm.slane %v448, 0
        %v498 = vmul.f32 %v497, %v496
        %v499 = vld [vmem:[#allocation2] sm:$0xff]
        %v500 = vld [vmem:[#allocation2 + $0x8] sm:$0xff]
        %v501 = vld [vmem:[#allocation2 + $0x10] sm:$0xff]
        %v502 = vld [vmem:[#allocation2 + $0x18] sm:$0xff]
        %v503 = vld [vmem:[%s5] sm:$0x1]
        %v505 = vperm.slane %v503, 0
        %vm507 = vcmask 261120
        %v509 = vsel %vm507, %v498, 0
        %511 = vmatpush.msra.mxu0 0.0
        %512 = vmatpush.msra.mxu0 0.0
        %513 = vmatpush.msra.mxu0 0.0
        %514 = vmatpush.msra.mxu0 0.0
        %515 = vmatpush.msra.mxu0 0.0
        %516 = vmatpush.msra.mxu0 0.0
        %517 = vmatpush.msra.mxu0 0.0
        %518 = vmatpush.msra.mxu0 0.0
        %519 = vmatpush.msra.mxu0 0.0
        %520 = vmatpush.msra.mxu0 0.0
        %521 = vmatpush.msra.mxu0 0.0
        %522 = vmatpush.msra.mxu0 0.0
        %523 = vmatpush.msra.mxu0 %v502
        %524 = vmatpush.msra.mxu0 %v501
        %525 = vmatpush.msra.mxu0 %v500
        %526 = vmatpush.msra.mxu0 %v499
        %527 = vmatmul.f32.gmra.mxu0 %v509
        %v528 = vpop.f32.mrf.mxu0
        %v529 = vadd.f32 %v505, %v528
        %530 = vdwg.mxu0
        %v531 = vmax.f32 %v529, 0.0
        %v532 = vand.u32 2147483647, %v529
        %v533 = vsub.f32 0.0, %v532
        %v534 = vmul.f32 %v533, 1.442695
        %v535 = vpow.pop %v534
        %v536 = vadd.f32 %v535, 1.0
        %v537 = vlog2.pop %v536
        %v538 = vmul.f32 %v537, 0.6931472
        %v539 = vmul.f32 -0.5, %v535
        %v540 = vadd.f32 %v539, 1.0
        %v541 = vmul.f32 %v540, %v535
        %v542 = vand.u32 2147483647, %v535
        %vm543 = vcmp.lt.f32.partialorder %v542, 0.0004427343
        %v544 = vsel %vm543, %v541, %v538
        %v545 = vadd.f32 %v531, %v544
        %v546 = vperm.slane %v448, 1
        %v547 = vmul.f32 %v546, %v545
        %v548 = vld [vmem:[#allocation5] sm:$0xff]
        %v549 = vld [vmem:[#allocation5 + $0x8] sm:$0xff]
        %v550 = vld [vmem:[#allocation5 + $0x10] sm:$0xff]
        %v551 = vld [vmem:[#allocation5 + $0x18] sm:$0xff]
        %v552 = vld [vmem:[%s7] sm:$0x1]
        %v554 = vperm.slane %v552, 0
        %v557 = vsel %vm507, %v547, 0
        %559 = vmatpush.msra.mxu0 0.0
        %560 = vmatpush.msra.mxu0 0.0
        %561 = vmatpush.msra.mxu0 0.0
        %562 = vmatpush.msra.mxu0 0.0
        %563 = vmatpush.msra.mxu0 0.0
        %564 = vmatpush.msra.mxu0 0.0
        %565 = vmatpush.msra.mxu0 0.0
        %566 = vmatpush.msra.mxu0 0.0
        %567 = vmatpush.msra.mxu0 0.0
        %568 = vmatpush.msra.mxu0 0.0
        %569 = vmatpush.msra.mxu0 0.0
        %570 = vmatpush.msra.mxu0 0.0
        %571 = vmatpush.msra.mxu0 %v551
        %572 = vmatpush.msra.mxu0 %v550
        %573 = vmatpush.msra.mxu0 %v549
        %574 = vmatpush.msra.mxu0 %v548
        %575 = vmatmul.f32.gmra.mxu0 %v557
        %v576 = vpop.f32.mrf.mxu0
        %v577 = vadd.f32 %v554, %v576
        %578 = vdwg.mxu0
        %v579 = vmax.f32 %v577, 0.0
        %v580 = vand.u32 2147483647, %v577
        %v581 = vsub.f32 0.0, %v580
        %v582 = vmul.f32 %v581, 1.442695
        %v583 = vpow.pop %v582
        %v584 = vadd.f32 %v583, 1.0
        %v585 = vlog2.pop %v584
        %v586 = vmul.f32 %v585, 0.6931472
        %v587 = vmul.f32 -0.5, %v583
        %v588 = vadd.f32 %v587, 1.0
        %v589 = vmul.f32 %v588, %v583
        %v590 = vand.u32 2147483647, %v583
        %vm591 = vcmp.lt.f32.partialorder %v590, 0.0004427343
        %v592 = vsel %vm591, %v589, %v586
        %v593 = vadd.f32 %v579, %v592
        %v594 = vperm.slane %v448, 2
        %v595 = vmul.f32 %v594, %v593
        %v596 = vld [vmem:[#allocation7] sm:$0xff]
        %v597 = vld [vmem:[#allocation7 + $0x8] sm:$0xff]
        %v598 = vld [vmem:[#allocation7 + $0x10] sm:$0xff]
        %v599 = vld [vmem:[#allocation7 + $0x18] sm:$0xff]
        %v600 = vld [vmem:[%s9] sm:$0x1]
        %v602 = vperm.slane %v600, 0
        %v605 = vsel %vm507, %v595, 0
        %607 = vmatpush.msra.mxu0 0.0
        %608 = vmatpush.msra.mxu0 0.0
        %609 = vmatpush.msra.mxu0 0.0
        %610 = vmatpush.msra.mxu0 0.0
        %611 = vmatpush.msra.mxu0 0.0
        %612 = vmatpush.msra.mxu0 0.0
        %613 = vmatpush.msra.mxu0 0.0
        %614 = vmatpush.msra.mxu0 0.0
        %615 = vmatpush.msra.mxu0 0.0
        %616 = vmatpush.msra.mxu0 0.0
        %617 = vmatpush.msra.mxu0 0.0
        %618 = vmatpush.msra.mxu0 0.0
        %619 = vmatpush.msra.mxu0 %v599
        %620 = vmatpush.msra.mxu0 %v598
        %621 = vmatpush.msra.mxu0 %v597
        %622 = vmatpush.msra.mxu0 %v596
        %623 = vmatmul.f32.gmra.mxu0 %v605
        %v624 = vpop.f32.mrf.mxu0
        %v625 = vadd.f32 %v602, %v624
        %626 = vdwg.mxu0
        %627 = vst [vmem:[%s435] sm:$0xff] %v625
        %s628 = sand.u32 %s270, 1
        %s629 = scalar_lea.sflag [#allocation4], %s628
        %s630 = sand.u32 %s270, 1
        %s631 = smul.addr %s630, 8
        %s632 = scalar_lea.vmem [#allocation8], %s631
        // Predicated region
        $region73: #{tpu_custom_call.1} parent=59 // pred_check
          %p633 = pneg %p280
        $region74: #{tpu_custom_call.1} parent=59 // pred_check_branch
          %635 = sbr.rel (%p633) target = $region76
        $region75: #{tpu_custom_call.1} parent=59 // pred_region
          %637 = vsyncadd %s629, 0
          %s638 = sadd.s32 %s31, %s30
          %s639 = smul.addr %s638, 8
          %s640 = scalar_lea.hbm %s10, %s639
          %s642 = sshll.u32 %s632, 4
          %s643 = int_to_ptr.vmem [resolvable:$true] %s642
          %s644 = sshll.u32 %s640, 4
          %s645 = int_to_ptr.hbm [resolvable:$true] %s644
          %647 = dma.vmem_to_hbm [thread:$0]  %s643, 128, %s645, %s629
        $region76: #{tpu_custom_call.1} parent=59 // pred_fallthru
          _
      $region60: #{tpu_custom_call.1} parent=5 // pred_fallthru
        _
      %p648 = scmp.le.s32.totalorder 2, %s21
      // Predicated region
      $region77: #{tpu_custom_call.1} parent=5 // pred_check
        %p649 = pneg %p648
      $region78: #{tpu_custom_call.1} parent=5 // pred_check_branch
        %651 = sbr.rel (%p649) target = $region80
      $region79: #{tpu_custom_call.1} parent=5 // pred_region
        %s652 = ssub.s32 %s21, 2
        // Predicated region
        $region81: #{tpu_custom_call.1} parent=79 // pred_check
          %p653 = pneg %p286
        $region82: #{tpu_custom_call.1} parent=79 // pred_check_branch
          %655 = sbr.rel (%p653) target = $region84
        $region83: #{tpu_custom_call.1} parent=79 // pred_region
          %s656 = sand.u32 %s271, 1
          %s657 = scalar_lea.sflag [#allocation4], %s656
          %s658 = sand.u32 %s271, 1
          %s659 = smul.addr %s658, 8
          %s660 = scalar_lea.vmem [#allocation8], %s659
          %662 = dma.done %s657, 128
        $region84: #{tpu_custom_call.1} parent=79 // pred_fallthru
          _
      $region80: #{tpu_custom_call.1} parent=5 // pred_fallthru
        _
    $region6: #{tpu_custom_call.1} parent=1 // loop_footer
      %s25 = sadd.s32 1, %s21
    $region7: #{tpu_custom_call.1} parent=1 // loop_footer_branch
      %20 = sbr.rel target = $region3
    $region8: #{tpu_custom_call.1} parent=1 // loop_exit
      _
    %663 = vsyncpa [#allocation3], 1
    %s664 = scalar_lea.sflag [#allocation3], 1
    %665 = vsyncpa %s664, 1
    %666 = vsyncpa [#allocation6], 1
    %667 = vsyncpa [#allocation4], 1
    %s668 = scalar_lea.sflag [#allocation4], 1
    %669 = vsyncpa %s668, 1

</llo_original>
